<compile_context>
chip_gen: v7x
topology: tpu7x:2x2x1
jax: 0.10.0
libtpu: 0.0.40
codegen_flags: <defaults>
</compile_context>

<pallas_src>
import math
import functools

import jax
import jax.numpy as jnp
from jax import lax
from jax.experimental import pallas as pl
from jax.experimental.pallas import tpu as pltpu


_NEG_INF = -1e30  # finite "minus infinity": avoids exp(-inf - -inf) = NaN


def _round_up(x, m):
    return ((x + m - 1) // m) * m


def _pick_n_block(n, target=512):
    """Largest multiple-of-128 divisor of n that is <= target (else n itself)."""
    if n <= target or n % 128 != 0:
        return n
    b = (target // 128) * 128
    while b >= 128:
        if n % b == 0:
            return b
        b -= 128
    return n


def _tpu_defaults():
    """(default seq block, vmem_limit_bytes) per TPU generation."""
    kind = ""
    try:
        kind = jax.devices()[0].device_kind.lower()
    except Exception:
        pass
    if "tpu7" in kind or "v7" in kind:
        # v7x: 256^2 MXU but only 64 MiB VMEM per TensorCore.
        return 256, 56 * 1024 * 1024
    if "v6" in kind:
        return 256, 100 * 1024 * 1024
    if "v5p" in kind:
        return 256, 100 * 1024 * 1024
    if "v5 lite" in kind or "v5e" in kind:
        # v5e: 128x128 MXU tiles already map cleanly; don't chase 256.
        return 128, 100 * 1024 * 1024
    return 128, 64 * 1024 * 1024


# --------------------------------------------------------------------------- #
# Kernel 1 (and fallback projection): tiled y = x @ W + b
# --------------------------------------------------------------------------- #
def _linear_kernel(x_ref, w_ref, b_ref, o_ref):
    """x_ref: (1, TQ, C)  w_ref: (C, TN)  b_ref: (1, TN)  o_ref: (1, TQ, TN)."""
    acc = jnp.dot(x_ref[0], w_ref[...], preferred_element_type=jnp.float32)
    o_ref[0] = (acc + b_ref[...]).astype(o_ref.dtype)


def _linear(x, w, b, *, block_t, block_n, out_dtype, vmem_limit):
    """Tiled linear. x: (B, T, C), w: (C, N), b: (1, N) -> (B, T, N).

    The N (output) dimension gets its own grid axis so the weight is streamed
    in (C, block_n) tiles instead of held fully resident in VMEM.
    """
    B, T, C = x.shape
    N = w.shape[1]
    nq = T // block_t
    nn = N // block_n
    return pl.pallas_call(
        _linear_kernel,
        out_shape=jax.ShapeDtypeStruct((B, T, N), out_dtype),
        grid=(B, nq, nn),
        in_specs=[
            # x block index is constant across the innermost n axis -> no refetch.
            pl.BlockSpec((1, block_t, C), lambda b_, i, n: (b_, i, 0)),
            pl.BlockSpec((C, block_n), lambda b_, i, n: (0, n)),
            pl.BlockSpec((1, block_n), lambda b_, i, n: (0, n)),
        ],
        out_specs=pl.BlockSpec((1, block_t, block_n), lambda b_, i, n: (b_, i, n)),
        compiler_params=pltpu.CompilerParams(
            dimension_semantics=("parallel", "parallel", "parallel"),
            vmem_limit_bytes=vmem_limit),
    )(x, w, b)


# --------------------------------------------------------------------------- #
# Kernel 2: flash attention (online softmax) (+ optional fused projection)
# --------------------------------------------------------------------------- #
def _flash_step(q_ref, k_ref, v_ref, m_sc, l_sc, acc_sc,
                *, seq_len, block_q, block_kv):
    """One (qi, ki) online-softmax update. Scratch carries state across ki."""
    ki = pl.program_id(2)
    q_start = pl.program_id(1) * block_q
    k_start = ki * block_kv

    @pl.when(ki == 0)
    def _init():
        m_sc[...] = jnp.full(m_sc.shape, _NEG_INF, m_sc.dtype)
        l_sc[...] = jnp.zeros(l_sc.shape, l_sc.dtype)
        acc_sc[...] = jnp.zeros(acc_sc.shape, acc_sc.dtype)

    # Causal tile pruning: fully-future kv tiles are skipped here AND their
    # K/V DMAs are elided via the clamped index_map in the wrapper.
    @pl.when(k_start < q_start + block_q)
    def _compute():
        q = q_ref[0]   # (H, TQ,  hd)  (Q already scaled via W_attn)
        k = k_ref[0]   # (H, TKV, hd)
        v = v_ref[0]   # (H, TKV, hd)

        s = jnp.einsum('hqd,hkd->hqk', q, k,
                       preferred_element_type=jnp.float32)     # (H, TQ, TKV) f32

        # Only diagonal tiles and tiles touching the padded key tail need the
        # iota/compare/select mask; fully-visible interior tiles skip it.
        def _masked(t):
            row = q_start + lax.broadcasted_iota(jnp.int32, (block_q, block_kv), 0)
            col = k_start + lax.broadcasted_iota(jnp.int32, (block_q, block_kv), 1)
            keep = (col <= row) & (col < seq_len)
            return jnp.where(keep[None, :, :], t, _NEG_INF)

        needs_mask = (k_start + block_kv > q_start) | (k_start + block_kv > seq_len)
        s = lax.cond(needs_mask, _masked, lambda t: t, s)

        m_prev = m_sc[...]                                      # (H, TQ)
        m_new = jnp.maximum(m_prev, jnp.max(s, axis=-1))        # (H, TQ)
        alpha = jnp.exp(m_prev - m_new)                         # (H, TQ)
        p = jnp.exp(s - m_new[:, :, None])                      # (H, TQ, TKV) f32

        l_sc[...] = alpha * l_sc[...] + jnp.sum(p, axis=-1)
        acc_sc[...] = alpha[:, :, None] * acc_sc[...] + jnp.einsum(
            'hqk,hkd->hqd', p.astype(v.dtype), v,
            preferred_element_type=jnp.float32)
        m_sc[...] = m_new


def _normalized(acc_sc, l_sc):
    """acc / l with an EUP reciprocal + two Newton steps (f32-exact)."""
    l = l_sc[...]
    r = pl.reciprocal(l, approx=True)
    r = r * (2.0 - l * r)
    r = r * (2.0 - l * r)
    return acc_sc[...] * r[:, :, None]                          # (H, TQ, hd) f32


def _flash_fused_kernel(q_ref, k_ref, v_ref, wp_ref, bp_ref, o_ref,
                        m_sc, l_sc, acc_sc,
                        *, seq_len, block_q, block_kv, n_head):
    """Flash attention with the output projection fused into finalize.

    wp_ref: (H, hd, C) per-head slabs of W_proj,  bp_ref: (1, C).
    """
    _flash_step(q_ref, k_ref, v_ref, m_sc, l_sc, acc_sc,
                seq_len=seq_len, block_q=block_q, block_kv=block_kv)

    @pl.when(pl.program_id(2) == pl.num_programs(2) - 1)
    def _finalize():
        y = _normalized(acc_sc, l_sc).astype(wp_ref.dtype)      # (H, TQ, hd)
        n_embd = wp_ref.shape[-1]
        # sum_h y_h @ Wp[h] == (concat_h y_h) @ W_proj. Per-head 2-D dots keep
        # each matmul MXU-lowerable and avoid materializing an (H, TQ, C)
        # intermediate; accumulation stays in f32.
        out = jnp.zeros((block_q, n_embd), jnp.float32)
        for h in range(n_head):
            out = out + jnp.dot(y[h], wp_ref[h],
                                preferred_element_type=jnp.float32)
        o_ref[0] = (out + bp_ref[...]).astype(o_ref.dtype)


def _flash_kernel(q_ref, k_ref, v_ref, o_ref, m_sc, l_sc, acc_sc,
                  *, seq_len, block_q, block_kv):
    """Flash attention emitting head-major context (projection done outside)."""
    _flash_step(q_ref, k_ref, v_ref, m_sc, l_sc, acc_sc,
                seq_len=seq_len, block_q=block_q, block_kv=block_kv)

    @pl.when(pl.program_id(2) == pl.num_programs(2) - 1)
    def _finalize():
        o_ref[0] = _normalized(acc_sc, l_sc).astype(o_ref.dtype)


# --------------------------------------------------------------------------- #
# Wrapper
# --------------------------------------------------------------------------- #
def causal_self_attention(x, w_attn, b_attn, w_proj, b_proj, n_head, *,
                          block_t=None, compute_dtype=None, fuse_proj=None,
                          vmem_limit_bytes=None):
    """Forward pass of CausalSelfAttention (eval mode).

    x: (B, T, C).  w_attn: (C, 3C), w_proj: (C, C) -- transposed vs PyTorch.
    b_attn: (3C,) or (1, 3C); b_proj: (C,) or (1, C).
    """
    B, T, C = x.shape
    assert C % n_head == 0
    hd = C // n_head
    out_dtype = x.dtype
    scale = 1.0 / math.sqrt(hd)

    default_block, default_vmem = _tpu_defaults()
    if block_t is None:
        block_t = default_block
    if vmem_limit_bytes is None:
        vmem_limit_bytes = default_vmem
    if compute_dtype is None:
        compute_dtype = x.dtype
    compute_dtype = jnp.dtype(compute_dtype)

    # Fold the 1/sqrt(hd) attention scale into the Q columns (in f32, pre-cast).
    w_attn_f = w_attn.astype(jnp.float32)
    b_attn_f = jnp.reshape(b_attn, (1, 3 * C)).astype(jnp.float32)
    w_attn_s = jnp.concatenate([w_attn_f[:, :C] * scale, w_attn_f[:, C:]], axis=1)
    b_attn_s = jnp.concatenate([b_attn_f[:, :C] * scale, b_attn_f[:, C:]], axis=1)

    # Cast activations + weights to the compute dtype (bf16 recommended on
    # v5e/v6e/v7x); biases and all accumulations stay f32.
    x_c = x.astype(compute_dtype)
    w_attn_s = w_attn_s.astype(compute_dtype)
    w_proj_c = w_proj.astype(compute_dtype)
    b_proj_2d = jnp.reshape(b_proj, (1, C)).astype(jnp.float32)

    # Sequence tiling: clamp block to (8-rounded) T, pad T to a block multiple.
    block_t = _round_up(min(block_t, _round_up(T, 8)), 8)
    T_pad = _round_up(T, block_t)
    if T_pad != T:
        x_c = jnp.pad(x_c, ((0, 0), (0, T_pad - T), (0, 0)))
    nq = T_pad // block_t

    # --- Kernel 1: QKV projection, tiled over (B, q tiles, 3C output tiles) --
    qkv = _linear(x_c, w_attn_s, b_attn_s,
                  block_t=block_t, block_n=_pick_n_block(3 * C),
                  out_dtype=compute_dtype, vmem_limit=vmem_limit_bytes)

    # Head-major layout for the attention kernel (one-off XLA shuffle).
    qkv = qkv.reshape(B, T_pad, 3, n_head, hd)
    q = jnp.transpose(qkv[:, :, 0], (0, 2, 1, 3))   # (B, H, T_pad, hd)
    k = jnp.transpose(qkv[:, :, 1], (0, 2, 1, 3))
    v = jnp.transpose(qkv[:, :, 2], (0, 2, 1, 3))

    if fuse_proj is None:
        # Only keep W_proj resident in the attention kernel when it is small
        # enough to leave VMEM headroom on v7x (64 MiB/TC).
        fuse_proj = (C * C * compute_dtype.itemsize) <= 8 * 1024 * 1024

    # kv is the innermost, "arbitrary" axis: scratch carries the online-softmax
    # state across it. B and qi stay "parallel" for megacore sharding (v7x).
    dim_sem = ("parallel", "parallel", "arbitrary")
    scratch = [
        pltpu.VMEM((n_head, block_t), jnp.float32),      # running max m
        pltpu.VMEM((n_head, block_t), jnp.float32),      # running sum l
        pltpu.VMEM((n_head, block_t, hd), jnp.float32),  # un-normalized acc
    ]
    q_spec = pl.BlockSpec((1, n_head, block_t, hd),
                          lambda b, qi, ki: (b, 0, qi, 0))
    # Causal DMA skip: clamp the kv block index so fully-future K/V tiles map
    # to the already-fetched block and Pallas elides the refetch.
    kv_spec = pl.BlockSpec((1, n_head, block_t, hd),
                           lambda b, qi, ki: (b, 0, jnp.minimum(ki, qi), 0))

    if fuse_proj:
        w_proj_r = w_proj_c.reshape(n_head, hd, C)       # per-head weight slabs
        kernel = functools.partial(_flash_fused_kernel, seq_len=T,
                                   block_q=block_t, block_kv=block_t,
                                   n_head=n_head)
        out = pl.pallas_call(
            kernel,
            out_shape=jax.ShapeDtypeStruct((B, T_pad, C), out_dtype),
            grid=(B, nq, nq),
            in_specs=[
                q_spec, kv_spec, kv_spec,
                pl.BlockSpec((n_head, hd, C), lambda b, qi, ki: (0, 0, 0)),
                pl.BlockSpec((1, C), lambda b, qi, ki: (0, 0)),
            ],
            out_specs=pl.BlockSpec((1, block_t, C), lambda b, qi, ki: (b, qi, 0)),
            scratch_shapes=scratch,
            compiler_params=pltpu.CompilerParams(
                dimension_semantics=dim_sem,
                vmem_limit_bytes=vmem_limit_bytes),
        )(q, k, v, w_proj_r, b_proj_2d)
    else:
        kernel = functools.partial(_flash_kernel, seq_len=T,
                                   block_q=block_t, block_kv=block_t)
        y = pl.pallas_call(
            kernel,
            out_shape=jax.ShapeDtypeStruct((B, n_head, T_pad, hd), compute_dtype),
            grid=(B, nq, nq),
            in_specs=[q_spec, kv_spec, kv_spec],
            out_specs=pl.BlockSpec((1, n_head, block_t, hd),
                                   lambda b, qi, ki: (b, 0, qi, 0)),
            scratch_shapes=scratch,
            compiler_params=pltpu.CompilerParams(
                dimension_semantics=dim_sem,
                vmem_limit_bytes=vmem_limit_bytes),
        )(q, k, v)
        ctx = jnp.transpose(y, (0, 2, 1, 3)).reshape(B, T_pad, C)
        out = _linear(ctx, w_proj_c, b_proj_2d,
                      block_t=block_t, block_n=_pick_n_block(C),
                      out_dtype=out_dtype, vmem_limit=vmem_limit_bytes)

    return out[:, :T, :]


# --------------------------------------------------------------------------- #
# Reference + test
# --------------------------------------------------------------------------- #
def _reference(x, w_attn, b_attn, w_proj, b_proj, n_head):
    """Plain-JAX reference mirroring the PyTorch forward (eval mode)."""
    B, T, C = x.shape
    hd = C // n_head
    qkv = x @ w_attn + b_attn
    q, k, v = jnp.split(qkv, 3, axis=-1)
    q = q.reshape(B, T, n_head, hd).transpose(0, 2, 1, 3)
    k = k.reshape(B, T, n_head, hd).transpose(0, 2, 1, 3)
    v = v.reshape(B, T, n_head, hd).transpose(0, 2, 1, 3)
    att = (q @ jnp.swapaxes(k, -2, -1)) * (1.0 / math.sqrt(hd))
    mask = jnp.tril(jnp.ones((T, T), dtype=bool))
    att = jnp.where(mask[None, None], att, -jnp.inf)
    att = jax.nn.softmax(att, axis=-1)
    y = att @ v
    y = y.transpose(0, 2, 1, 3).reshape(B, T, C)
    return y @ w_proj + b_proj


if __name__ == "__main__":
    # Small config; T=40 with block_t=16 exercises multi-tile online softmax,
    # causal DMA-skip, diagonal-only masking, and key padding (T_pad=48).
    B, T, C, n_head = 2, 40, 32, 4

    key = jax.random.PRNGKey(0)
    kx, kw1, kb1, kw2, kb2 = jax.random.split(key, 5)

    x = jax.random.normal(kx, (B, T, C), dtype=jnp.float32)
    bound = 1.0 / math.sqrt(C)
    w_attn = jax.random.uniform(kw1, (C, 3 * C), jnp.float32, -bound, bound)
    b_attn = jax.random.uniform(kb1, (3 * C,), jnp.float32, -bound, bound)
    w_proj = jax.random.uniform(kw2, (C, C), jnp.float32, -bound, bound)
    b_proj = jax.random.uniform(kb2, (C,), jnp.float32, -bound, bound)

    ref = _reference(x, w_attn, b_attn, w_proj, b_proj, n_head)

    # 1) f32, fused-projection path (default for small C).
    out = jax.block_until_ready(
        causal_self_attention(x, w_attn, b_attn, w_proj, b_proj, n_head,
                              block_t=16))
    assert out.shape == (B, T, C)
    err = float(jnp.max(jnp.abs(out - ref)))
    assert jnp.allclose(out, ref, atol=2e-4, rtol=2e-4), ("fused f32", err)

    # 2) f32, unfused-projection path (used automatically when W_proj is too
    #    large to keep resident in VMEM, e.g. big C on v7x).
    out_u = jax.block_until_ready(
        causal_self_attention(x, w_attn, b_attn, w_proj, b_proj, n_head,
                              block_t=16, fuse_proj=False))
    err_u = float(jnp.max(jnp.abs(out_u - ref)))
    assert jnp.allclose(out_u, ref, atol=2e-4, rtol=2e-4), ("unfused f32", err_u)

    # 3) bf16 compute dtype (MXU-native rate, halved HBM traffic); f32 accum.
    out_bf = jax.block_until_ready(
        causal_self_attention(x, w_attn, b_attn, w_proj, b_proj, n_head,
                              block_t=16, compute_dtype=jnp.bfloat16))
    err_bf = float(jnp.max(jnp.abs(out_bf.astype(jnp.float32) - ref)))
    assert err_bf < 5e-2, ("bf16", err_bf)

    print("KERNEL_OK")
</pallas_src>

<mosaic_0001>
module attributes {stable_mosaic.version = 11 : i64} {
  func.func @_linear_kernel(%arg0: i32, %arg1: i32, %arg2: i32, %arg3: memref<1x16x32xf32, #tpu.memory_space<vmem>>, %arg4: memref<32x96xf32, #tpu.memory_space<vmem>>, %arg5: memref<1x96xf32, #tpu.memory_space<vmem>>, %arg6: memref<1x16x96xf32, #tpu.memory_space<vmem>>) attributes {dimension_semantics = [#tpu.dimension_semantics<parallel>, #tpu.dimension_semantics<parallel>, #tpu.dimension_semantics<parallel>], iteration_bounds = array<i64: 2, 3, 1>, scalar_prefetch = 0 : i64, scratch_operands = 0 : i64, tpu.core_type = #tpu.core_type<tc>, window_params = [{transform_indices = @transform_0, window_bounds = array<i64: 1, 16, 32>}, {transform_indices = @transform_1, window_bounds = array<i64: 32, 96>}, {transform_indices = @transform_2, window_bounds = array<i64: 1, 96>}, {transform_indices = @transform_3, window_bounds = array<i64: 1, 16, 96>}]} {
    %c0 = arith.constant 0 : index
    %c0_0 = arith.constant 0 : index
    %c0_1 = arith.constant 0 : index
    %0 = vector.load %arg3[%c0, %c0_0, %c0_1] : memref<1x16x32xf32, #tpu.memory_space<vmem>>, vector<1x16x32xf32>
    %1 = vector.shape_cast %0 : vector<1x16x32xf32> to vector<16x32xf32>
    %c0_2 = arith.constant 0 : index
    %c0_3 = arith.constant 0 : index
    %2 = vector.load %arg4[%c0_2, %c0_3] : memref<32x96xf32, #tpu.memory_space<vmem>>, vector<32x96xf32>
    %cst = arith.constant dense<0.000000e+00> : vector<16x96xf32>
    %3 = tpu.matmul %1, %2, %cst {dimension_numbers = #tpu.dot_dimension_numbers<[1], [0], [0], [1], [0, 0, 1, 1], [], []>} : vector<16x32xf32>, vector<32x96xf32>, vector<16x96xf32> -> vector<16x96xf32>
    %c0_4 = arith.constant 0 : index
    %c0_5 = arith.constant 0 : index
    %4 = vector.load %arg5[%c0_4, %c0_5] : memref<1x96xf32, #tpu.memory_space<vmem>>, vector<1x96xf32>
    %5 = vector.broadcast %4 : vector<1x96xf32> to vector<16x96xf32>
    %6 = arith.addf %3, %5 : vector<16x96xf32>
    %c0_6 = arith.constant 0 : index
    %c0_7 = arith.constant 0 : index
    %c0_8 = arith.constant 0 : index
    %7 = vector.load %arg6[%c0_6, %c0_7, %c0_8] : memref<1x16x96xf32, #tpu.memory_space<vmem>>, vector<1x16x96xf32>
    %8 = vector.shape_cast %7 : vector<1x16x96xf32> to vector<16x96xf32>
    %9 = vector.shape_cast %6 : vector<16x96xf32> to vector<1x16x96xf32>
    tpu.vector_store %arg6[%c0_6, %c0_7, %c0_8], %9 {strides = array<i32>} : memref<1x16x96xf32, #tpu.memory_space<vmem>>, vector<1x16x96xf32>,
    return
  }
  func.func @transform_0(%arg0: i32, %arg1: i32, %arg2: i32) -> (i32, i32, i32) {
    %c0_i32 = arith.constant 0 : i32
    %c0_i32_0 = arith.constant 0 : i32
    return %arg0, %arg1, %c0_i32 : i32, i32, i32
  }
  func.func @transform_1(%arg0: i32, %arg1: i32, %arg2: i32) -> (i32, i32) {
    %c0_i32 = arith.constant 0 : i32
    %c0_i32_0 = arith.constant 0 : i32
    return %c0_i32, %arg2 : i32, i32
  }
  func.func @transform_2(%arg0: i32, %arg1: i32, %arg2: i32) -> (i32, i32) {
    %c0_i32 = arith.constant 0 : i32
    %c0_i32_0 = arith.constant 0 : i32
    return %c0_i32, %arg2 : i32, i32
  }
  func.func @transform_3(%arg0: i32, %arg1: i32, %arg2: i32) -> (i32, i32, i32) {
    %c0_i32 = arith.constant 0 : i32
    return %arg0, %arg1, %arg2 : i32, i32, i32
  }
}

</mosaic_0001>

<llo_original>
// kernel: tpu_custom_call.1
$region0: #{tpu_custom_call.1}
  #allocation0 [shape = 'u32[]', space=smem, size = 0x4, offset = 0x4, fixed_abs, tag = 'smem constant byte address 0x4 - core index']
  #allocation1 [shape = 'u32[144,128]{1,0:T(1,128)}', space=vmem, size = 0x12000, scoped, tag = 'internal scratch']
  %s0 = inlined_call_operand.hbm [shape: f32[2,48,32], index: 0, kind: input, shape index: {}]
  %s1 = inlined_call_operand.hbm [shape: f32[32,96], index: 1, kind: input, shape index: {}]
  %s2 = inlined_call_operand.hbm [shape: f32[1,96], index: 2, kind: input, shape index: {}]
  %s3 = inlined_call_operand.hbm [shape: f32[2,48,96], index: 3, kind: output, shape index: {}]
  %s4 = sld [smem:[#allocation0]]
  $region57: #{tpu_custom_call.1} parent=0
    _
  %s6 = ssub.s32 1, %s4
  %s7 = scalar_select 0, %s6, %s4
  $region1: #{tpu_custom_call.1} parent=0
    #allocation2 [shape = 'u8[16384]{0}', space=vmem, size = 0x4000, scoped, tag = 'input window, operand 0']
    #allocation3 [shape = 's32[2]{0}', space=sflag, size = 0x8, scoped, tag = 'scoped memory for tpu_custom_call.1']
    #allocation4 [shape = 's32[2]{0}', space=sflag, size = 0x8, scoped, tag = 'scoped memory for tpu_custom_call.1']
    #allocation5 [shape = 'u8[16384]{0}', space=vmem, size = 0x4000, scoped, tag = 'input window, operand 1, single buffered']
    #allocation6 [shape = 's32[1]{0}', space=sflag, size = 0x4, scoped, tag = 'scoped memory for tpu_custom_call.1']
    #allocation7 [shape = 'u8[512]{0}', space=vmem, size = 0x400, scoped, tag = 'input window, operand 2, single buffered']
    #allocation8 [shape = 'u8[16384]{0}', space=vmem, size = 0x4000, scoped, tag = 'output window, operand 0']
    %8 = vsyncpa [#allocation3], 0
    %s9 = scalar_lea.sflag [#allocation3], 1
    %10 = vsyncpa %s9, 0
    %11 = vsyncpa [#allocation6], 0
    %12 = vsyncpa [#allocation4], 0
    %s13 = scalar_lea.sflag [#allocation4], 1
    %14 = vsyncpa %s13, 0
    loop: start=0, step=1, limit=8
    $region2: #{tpu_custom_call.1} parent=1 // loop_pre_header
      _
    $region3: #{tpu_custom_call.1} parent=1 // loop_header
      %s16 = sphi 0, %s20
      %p17 = scmp.ge.s32.totalorder %s16, 8
      %s23 = sphi 0, %s42
      %s24 = sphi 0, %s38
      %s25 = sphi 0, %s34
      %s26 = sphi 0, %s23
      %s27 = sphi 0, %s24
      %s28 = sphi 0, %s25
      %s29 = sphi 0, %s26
      %s30 = sphi 0, %s27
      %s31 = sphi 0, %s28
      %s47 = sphi 0, %s49
      %s50 = sphi 0, %s47
      %s51 = sphi 0, %s50
      %s67 = sphi 0, %s51
      %s73 = sphi 0, %s75
      %s76 = sphi 0, %s73
      %s77 = sphi 0, %s76
      %s93 = sphi 0, %s77
      %s99 = sphi 0, %s101
      %s102 = sphi 0, %s99
      %s103 = sphi 0, %s102
      %s119 = sphi 0, %s103
      %s129 = sphi 0, %s131
      %s132 = sphi 0, %s129
      %s133 = sphi 0, %s132
      %s149 = sphi 0, %s133
    $region4: #{tpu_custom_call.1} parent=1 // loop_header_branch
      %19 = sbr.rel (%p17) target = $region8
    $region5: #{tpu_custom_call.1} parent=1 // loop_body
      %s21 = ssub.s32 %s16, 1
      %s22 = ssub.s32 %s16, 2
      %s32 = sadd.s32 1, %s25
      %p33 = scmp.ge.s32.totalorder %s32, 1
      %s34 = scalar_select %p33, 0, %s32
      %s35 = sadd.s32 1, %s24
      %s36 = scalar_select %p33, %s35, %s24
      %p37 = scmp.ge.s32.totalorder %s36, 3
      %s38 = scalar_select %p37, 0, %s36
      %s39 = sadd.s32 1, %s23
      %s40 = scalar_select %p37, %s39, %s23
      %p41 = scmp.ge.s32.totalorder %s40, 2
      %s42 = scalar_select %p41, 0, %s40
      %s43 = ssub.s32 %s23, %s42
      %s44 = ssub.s32 %s24, %s38
      %s45 = sor.u32 %s43, %s44
      %p46 = scmp.eq.s32.totalorder %s45, 0
      %s48 = sadd.s32 %s47, 1
      %s49 = scalar_select %p46, %s47, %s48
      %p52 = pneg %p46
      %p53 = scmp.eq.s32.totalorder %s16, 5
      %p54 = por %p52, %p53
      %p55 = scmp.ne.s32.totalorder %s47, %s50
      %p56 = scmp.eq.s32.totalorder %s16, 0
      %p57 = por %p55, %p56
      %p58 = scmp.ne.s32.totalorder %s47, %s50
      %p59 = scmp.eq.s32.totalorder %s21, 5
      %p60 = por %p58, %p59
      %p61 = scmp.ne.s32.totalorder %s50, %s51
      %p62 = scmp.eq.s32.totalorder %s21, 0
      %p63 = por %p61, %p62
      %p64 = scmp.ne.s32.totalorder %s50, %s51
      %p65 = scmp.eq.s32.totalorder %s22, 5
      %p66 = por %p64, %p65
      %p68 = scmp.ne.s32.totalorder %s51, %s67
      %p69 = scmp.eq.s32.totalorder %s22, 0
      %p70 = por %p68, %p69
      %s71 = ssub.s32 %s25, %s34
      %p72 = scmp.eq.s32.totalorder %s71, 0
      %s74 = sadd.s32 %s73, 1
      %s75 = scalar_select %p72, %s73, %s74
      %p78 = pneg %p72
      %p79 = scmp.eq.s32.totalorder %s16, 5
      %p80 = por %p78, %p79
      %p81 = scmp.ne.s32.totalorder %s73, %s76
      %p82 = scmp.eq.s32.totalorder %s16, 0
      %p83 = por %p81, %p82
      %p84 = scmp.ne.s32.totalorder %s73, %s76
      %p85 = scmp.eq.s32.totalorder %s21, 5
      %p86 = por %p84, %p85
      %p87 = scmp.ne.s32.totalorder %s76, %s77
      %p88 = scmp.eq.s32.totalorder %s21, 0
      %p89 = por %p87, %p88
      %p90 = scmp.ne.s32.totalorder %s76, %s77
      %p91 = scmp.eq.s32.totalorder %s22, 5
      %p92 = por %p90, %p91
      %p94 = scmp.ne.s32.totalorder %s77, %s93
      %p95 = scmp.eq.s32.totalorder %s22, 0
      %p96 = por %p94, %p95
      %s97 = ssub.s32 %s25, %s34
      %p98 = scmp.eq.s32.totalorder %s97, 0
      %s100 = sadd.s32 %s99, 1
      %s101 = scalar_select %p98, %s99, %s100
      %p104 = pneg %p98
      %p105 = scmp.eq.s32.totalorder %s16, 5
      %p106 = por %p104, %p105
      %p107 = scmp.ne.s32.totalorder %s99, %s102
      %p108 = scmp.eq.s32.totalorder %s16, 0
      %p109 = por %p107, %p108
      %p110 = scmp.ne.s32.totalorder %s99, %s102
      %p111 = scmp.eq.s32.totalorder %s21, 5
      %p112 = por %p110, %p111
      %p113 = scmp.ne.s32.totalorder %s102, %s103
      %p114 = scmp.eq.s32.totalorder %s21, 0
      %p115 = por %p113, %p114
      %p116 = scmp.ne.s32.totalorder %s102, %s103
      %p117 = scmp.eq.s32.totalorder %s22, 5
      %p118 = por %p116, %p117
      %p120 = scmp.ne.s32.totalorder %s103, %s119
      %p121 = scmp.eq.s32.totalorder %s22, 0
      %p122 = por %p120, %p121
      %s123 = ssub.s32 %s23, %s42
      %s124 = ssub.s32 %s24, %s38
      %s125 = sor.u32 %s123, %s124
      %s126 = ssub.s32 %s25, %s34
      %s127 = sor.u32 %s125, %s126
      %p128 = scmp.eq.s32.totalorder %s127, 0
      %s130 = sadd.s32 %s129, 1
      %s131 = scalar_select %p128, %s129, %s130
      %p134 = pneg %p128
      %p135 = scmp.eq.s32.totalorder %s16, 5
      %p136 = por %p134, %p135
      %p137 = scmp.ne.s32.totalorder %s129, %s132
      %p138 = scmp.eq.s32.totalorder %s16, 0
      %p139 = por %p137, %p138
      %p140 = scmp.ne.s32.totalorder %s129, %s132
      %p141 = scmp.eq.s32.totalorder %s21, 5
      %p142 = por %p140, %p141
      %p143 = scmp.ne.s32.totalorder %s132, %s133
      %p144 = scmp.eq.s32.totalorder %s21, 0
      %p145 = por %p143, %p144
      %p146 = scmp.ne.s32.totalorder %s132, %s133
      %p147 = scmp.eq.s32.totalorder %s22, 5
      %p148 = por %p146, %p147
      %p150 = scmp.ne.s32.totalorder %s133, %s149
      %p151 = scmp.eq.s32.totalorder %s22, 0
      %p152 = por %p150, %p151
      %p153 = scmp.le.s32.totalorder 1, %s16
      %p154 = scmp.lt.s32.totalorder %s16, 7
      %p155 = pnand %p153, %p154
      %p156 = pneg %p155
      // Predicated region
      $region9: #{tpu_custom_call.1} parent=5 // pred_check
        _
      $region10: #{tpu_custom_call.1} parent=5 // pred_check_branch
        %158 = sbr.rel (%p155) target = $region12
      $region11: #{tpu_custom_call.1} parent=5 // pred_region
        %s159 = ssub.s32 %s16, 1
        // Predicated region
        $region13: #{tpu_custom_call.1} parent=11 // pred_check
          %p160 = pneg %p89
        $region14: #{tpu_custom_call.1} parent=11 // pred_check_branch
          %162 = sbr.rel (%p160) target = $region16
        $region15: #{tpu_custom_call.1} parent=11 // pred_region
          %s164 = ssub.s32 512, 512
          %165 = vsyncadd [#allocation6], %s164
          %s166 = smul.addr %s28, 128
          %s167 = scalar_lea.hbm %s1, %s166
          %s168 = sshll.u32 [#allocation5], 4
          %s169 = int_to_ptr.vmem [resolvable:$true] %s168
          %174 = dma.hbm_to_vmem [thread:$0]  %s167, 512, %s169, [#allocation6], 128, 128, 8
        $region16: #{tpu_custom_call.1} parent=11 // pred_fallthru
          _
        // Predicated region
        $region17: #{tpu_custom_call.1} parent=11 // pred_check
          %p175 = pneg %p115
        $region18: #{tpu_custom_call.1} parent=11 // pred_check_branch
          %177 = sbr.rel (%p175) target = $region20
        $region19: #{tpu_custom_call.1} parent=11 // pred_region
          %s179 = ssub.s32 16, 16
          %180 = vsyncadd [#allocation6], %s179
          %s181 = smul.addr %s28, 16
          %s182 = scalar_lea.hbm %s2, %s181
          %s184 = sshll.u32 [#allocation7], 4
          %s185 = int_to_ptr.vmem [resolvable:$true] %s184
          %187 = dma.hbm_to_vmem [thread:$0]  %s182, 16, %s185, [#allocation6]
        $region20: #{tpu_custom_call.1} parent=11 // pred_fallthru
          _
      $region12: #{tpu_custom_call.1} parent=5 // pred_fallthru
        _
      %p188 = scmp.lt.s32.totalorder %s16, 6
      // Predicated region
      $region21: #{tpu_custom_call.1} parent=5 // pred_check
        %p189 = pneg %p188
      $region22: #{tpu_custom_call.1} parent=5 // pred_check_branch
        %191 = sbr.rel (%p189) target = $region24
      $region23: #{tpu_custom_call.1} parent=5 // pred_region
        // Predicated region
        $region25: #{tpu_custom_call.1} parent=23 // pred_check
          %p192 = pneg %p57
        $region26: #{tpu_custom_call.1} parent=23 // pred_check_branch
          %194 = sbr.rel (%p192) target = $region28
        $region27: #{tpu_custom_call.1} parent=23 // pred_region
          %s195 = sand.u32 %s47, 1
          %s196 = scalar_lea.sflag [#allocation3], %s195
          %s197 = sand.u32 %s47, 1
          %s198 = smul.addr %s197, 16
          %s199 = scalar_lea.vmem [#allocation2], %s198
          %s200 = smul.u32 2, %s24
          %s202 = ssub.s32 256, 256
          %203 = vsyncadd %s196, %s202
          %s204 = smul.addr %s23, 6
          %s205 = sadd.s32 %s200, %s204
          %s206 = smul.addr %s205, 128
          %s207 = scalar_lea.hbm %s0, %s206
          %s208 = sshll.u32 %s199, 4
          %s209 = int_to_ptr.vmem [resolvable:$true] %s208
          %214 = dma.hbm_to_vmem [thread:$0]  %s207, 256, %s209, %s196, 128, 128, 8
        $region28: #{tpu_custom_call.1} parent=23 // pred_fallthru
          _
      $region24: #{tpu_custom_call.1} parent=5 // pred_fallthru
        _
      %p215 = scmp.le.s32.totalorder 1, %s16
      %p216 = scmp.lt.s32.totalorder %s16, 7
      %p217 = pnand %p215, %p216
      %p218 = pneg %p217
      // Predicated region
      $region29: #{tpu_custom_call.1} parent=5 // pred_check
        _
      $region30: #{tpu_custom_call.1} parent=5 // pred_check_branch
        %220 = sbr.rel (%p217) target = $region32
      $region31: #{tpu_custom_call.1} parent=5 // pred_region
        %s221 = ssub.s32 %s16, 1
        %s222 = sand.u32 %s50, 1
        %s223 = scalar_lea.sflag [#allocation3], %s222
        %s224 = sand.u32 %s50, 1
        %s225 = smul.addr %s224, 16
        %s226 = scalar_lea.vmem [#allocation2], %s225
        // Predicated region
        $region33: #{tpu_custom_call.1} parent=31 // pred_check
          %p227 = pneg %p63
        $region34: #{tpu_custom_call.1} parent=31 // pred_check_branch
          %229 = sbr.rel (%p227) target = $region36
        $region35: #{tpu_custom_call.1} parent=31 // pred_region
          %230 = dma.done %s223, 256
        $region36: #{tpu_custom_call.1} parent=31 // pred_fallthru
          _
        // Predicated region
        $region37: #{tpu_custom_call.1} parent=31 // pred_check
          %p231 = pneg %p89
        $region38: #{tpu_custom_call.1} parent=31 // pred_check_branch
          %233 = sbr.rel (%p231) target = $region40
        $region39: #{tpu_custom_call.1} parent=31 // pred_region
          %234 = dma.done [#allocation6], 512
        $region40: #{tpu_custom_call.1} parent=31 // pred_fallthru
          _
        // Predicated region
        $region41: #{tpu_custom_call.1} parent=31 // pred_check
          %p235 = pneg %p115
        $region42: #{tpu_custom_call.1} parent=31 // pred_check_branch
          %237 = sbr.rel (%p235) target = $region44
        $region43: #{tpu_custom_call.1} parent=31 // pred_region
          %238 = dma.done [#allocation6], 16
        $region44: #{tpu_custom_call.1} parent=31 // pred_fallthru
          _
        %s239 = sand.u32 %s50, 1
        %s240 = scalar_lea.sflag [#allocation3], %s239
        %s241 = sand.u32 %s50, 1
        %s242 = smul.addr %s241, 16
        %s243 = scalar_lea.vmem [#allocation2], %s242
        %p244 = pneg %p63
        %p245 = pneg %p60
        %p246 = pneg %p89
        %p247 = pneg %p86
        %p248 = pneg %p115
        %p249 = pneg %p112
        %p250 = pneg %p145
        %p251 = pneg %p142
        %s252 = sand.u32 %s132, 1
        %s253 = scalar_lea.sflag [#allocation4], %s252
        %s254 = sand.u32 %s132, 1
        %s255 = smul.addr %s254, 16
        %s256 = scalar_lea.vmem [#allocation8], %s255
        %s257 = smul.u32 2, %s27
        %s258 = smul.u32 2, %s27
        %v259 = vld [vmem:[%s226] sm:$0xff]
        %v260 = vld [vmem:[%s226 + $0x8] sm:$0xff]
        %v261 = vld [vmem:[#allocation5] sm:$0xff]
        %v262 = vld [vmem:[#allocation5 + $0x8] sm:$0xff]
        %v263 = vld [vmem:[#allocation5 + $0x10] sm:$0xff]
        %v264 = vld [vmem:[#allocation5 + $0x18] sm:$0xff]
        %v265 = vld [vmem:[#allocation7] sm:$0x1]
        %v267 = vlaneseq
        %v268 = vshrl.u32 %v267, 7
        %v269 = vsub.s32 0, %v268
        %v270 = vrot.slane %v265, %v269
        %vm272 = vcmask 261120
        %v274 = vsel %vm272, %v259, 0
        %v277 = vsel %vm272, %v260, 0
        %279 = vmatprep.subr.mxu0 0.0
        %280 = vmatpush1.msra.mxu0 %v261
        %281 = vmatprep.subr.mxu0 0.0
        %282 = vmatpush1.msra.mxu0 %v262
        %283 = vmatprep.subr.mxu0 0.0
        %284 = vmatpush1.msra.mxu0 %v263
        %285 = vmatprep.subr.mxu0 0.0
        %286 = vmatpush1.msra.mxu0 %v264
        %287 = vmatprep.subr.mxu0 0.0
        %288 = vmatpush1.msra.mxu0 0.0
        %289 = vmatprep.subr.mxu0 0.0
        %290 = vmatpush1.msra.mxu0 0.0
        %291 = vmatprep.subr.mxu0 0.0
        %292 = vmatpush1.msra.mxu0 0.0
        %293 = vmatprep.subr.mxu0 0.0
        %294 = vmatpush1.msra.mxu0 0.0
        %295 = vmatprep.subr.mxu0 0.0
        %296 = vmatpush1.msra.mxu0 0.0
        %297 = vmatprep.subr.mxu0 0.0
        %298 = vmatpush1.msra.mxu0 0.0
        %299 = vmatprep.subr.mxu0 0.0
        %300 = vmatpush1.msra.mxu0 0.0
        %301 = vmatprep.subr.mxu0 0.0
        %302 = vmatpush1.msra.mxu0 0.0
        %303 = vmatprep.subr.mxu0 0.0
        %304 = vmatpush1.msra.mxu0 0.0
        %305 = vmatprep.subr.mxu0 0.0
        %306 = vmatpush1.msra.mxu0 0.0
        %307 = vmatprep.subr.mxu0 0.0
        %308 = vmatpush1.msra.mxu0 0.0
        %309 = vmatprep.subr.mxu0 0.0
        %310 = vmatpush1.msra.mxu0 0.0
        %311 = vmatprep.subr.mxu0 0.0
        %312 = vmatpush1.msra.mxu0 0.0
        %313 = vmatprep.subr.mxu0 0.0
        %314 = vmatpush1.msra.mxu0 0.0
        %315 = vmatprep.subr.mxu0 0.0
        %316 = vmatpush1.msra.mxu0 0.0
        %317 = vmatprep.subr.mxu0 0.0
        %318 = vmatpush1.msra.mxu0 0.0
        %319 = vmatprep.subr.mxu0 0.0
        %320 = vmatpush1.msra.mxu0 0.0
        %321 = vmatprep.subr.mxu0 0.0
        %322 = vmatpush1.msra.mxu0 0.0
        %323 = vmatprep.subr.mxu0 0.0
        %324 = vmatpush1.msra.mxu0 0.0
        %325 = vmatprep.subr.mxu0 0.0
        %326 = vmatpush1.msra.mxu0 0.0
        %327 = vmatprep.subr.mxu0 0.0
        %328 = vmatpush1.msra.mxu0 0.0
        %329 = vmatprep.subr.mxu0 0.0
        %330 = vmatpush1.msra.mxu0 0.0
        %331 = vmatprep.subr.mxu0 0.0
        %332 = vmatpush1.msra.mxu0 0.0
        %333 = vmatprep.subr.mxu0 0.0
        %334 = vmatpush1.msra.mxu0 0.0
        %335 = vmatprep.subr.mxu0 0.0
        %336 = vmatpush1.msra.mxu0 0.0
        %337 = vmatprep.subr.mxu0 0.0
        %338 = vmatpush1.msra.mxu0 0.0
        %339 = vmatprep.subr.mxu0 0.0
        %340 = vmatpush1.msra.mxu0 0.0
        %341 = vmatprep.subr.mxu0 0.0
        %342 = vmatpush1.msra.mxu0 0.0
        %343 = vmatprep.mubr.f32.mxu0 0.0
        %344 = vmatmul.mubr.f32.gmra.mrb[0].mxu0 %v274
        %v345 = vpop.f32.mrb[0].mxu0
        %v346 = vadd.f32 %v270, %v345
        %v347 = vpop.f32.mrb[0].mxu0
        %348 = vmatprep.mubr.f32.mxu0 0.0
        %349 = vmatmul.mubr.f32.gmra.mrb[0].mxu0 %v277
        %v350 = vpop.f32.mrb[0].mxu0
        %v351 = vadd.f32 %v270, %v350
        %v352 = vpop.f32.mrb[0].mxu0
        %353 = vdwg.mxu0
        %vm354 = vcmask 785408
        %355 = vst.msk [vmem:[%s256] sm:$0xff] %vm354, %v346
        %356 = vst.msk [vmem:[%s256 + $0x8] sm:$0xff] %vm354, %v351
        %s357 = sand.u32 %s132, 1
        %s358 = scalar_lea.sflag [#allocation4], %s357
        %s359 = sand.u32 %s132, 1
        %s360 = smul.addr %s359, 16
        %s361 = scalar_lea.vmem [#allocation8], %s360
        // Predicated region
        $region45: #{tpu_custom_call.1} parent=31 // pred_check
          %p362 = pneg %p142
        $region46: #{tpu_custom_call.1} parent=31 // pred_check_branch
          %364 = sbr.rel (%p362) target = $region48
        $region47: #{tpu_custom_call.1} parent=31 // pred_region
          %s365 = smul.u32 2, %s27
          %s367 = ssub.s32 256, 256
          %368 = vsyncadd %s358, %s367
          %s369 = sadd.s32 %s28, %s365
          %s370 = smul.addr %s26, 6
          %s371 = sadd.s32 %s369, %s370
          %s372 = smul.addr %s371, 128
          %s373 = scalar_lea.hbm %s3, %s372
          %s374 = sshll.u32 %s361, 4
          %s375 = int_to_ptr.vmem [resolvable:$true] %s374
          %380 = dma.vmem_to_hbm [thread:$0]  %s375, 256, %s373, %s358, 128, 128, 8
        $region48: #{tpu_custom_call.1} parent=31 // pred_fallthru
          _
      $region32: #{tpu_custom_call.1} parent=5 // pred_fallthru
        _
      %p381 = scmp.le.s32.totalorder 2, %s16
      // Predicated region
      $region49: #{tpu_custom_call.1} parent=5 // pred_check
        %p382 = pneg %p381
      $region50: #{tpu_custom_call.1} parent=5 // pred_check_branch
        %384 = sbr.rel (%p382) target = $region52
      $region51: #{tpu_custom_call.1} parent=5 // pred_region
        %s385 = ssub.s32 %s16, 2
        // Predicated region
        $region53: #{tpu_custom_call.1} parent=51 // pred_check
          %p386 = pneg %p148
        $region54: #{tpu_custom_call.1} parent=51 // pred_check_branch
          %388 = sbr.rel (%p386) target = $region56
        $region55: #{tpu_custom_call.1} parent=51 // pred_region
          %s389 = sand.u32 %s133, 1
          %s390 = scalar_lea.sflag [#allocation4], %s389
          %s391 = sand.u32 %s133, 1
          %s392 = smul.addr %s391, 16
          %s393 = scalar_lea.vmem [#allocation8], %s392
          %394 = dma.done %s390, 256
        $region56: #{tpu_custom_call.1} parent=51 // pred_fallthru
          _
      $region52: #{tpu_custom_call.1} parent=5 // pred_fallthru
        _
    $region6: #{tpu_custom_call.1} parent=1 // loop_footer
      %s20 = sadd.s32 1, %s16
    $region7: #{tpu_custom_call.1} parent=1 // loop_footer_branch
      %15 = sbr.rel target = $region3
    $region8: #{tpu_custom_call.1} parent=1 // loop_exit
      _
    %395 = vsyncpa [#allocation3], 1
    %s396 = scalar_lea.sflag [#allocation3], 1
    %397 = vsyncpa %s396, 1
    %398 = vsyncpa [#allocation6], 1
    %399 = vsyncpa [#allocation4], 1
    %s400 = scalar_lea.sflag [#allocation4], 1
    %401 = vsyncpa %s400, 1

</llo_original>
